<compile_context>
chip_gen: v6e
topology: v6e:2x2x1
jax: 0.10.0
libtpu: 0.0.40
codegen_flags: <defaults>
</compile_context>

<pallas_src>
import functools
import math

import jax
import jax.numpy as jnp
from jax import lax
from jax.experimental import pallas as pl
from jax.experimental.pallas import tpu as pltpu


def _self_attention_kernel(x_ref, wqkv_ref, a_ref, w_ref, *, k_size, v_size):
    """One sequence per grid step.

    x_ref    : (N, E)      input sequence (leading batch dim squeezed by BlockSpec)
    wqkv_ref : (2K+V, E)   fused [Wq*scale; Wk; Wv] in PyTorch (out, in) layout
    a_ref    : (N, V)      output A = softmax(QK^T / sqrt(K)) @ V
    w_ref    : (N, N)      output attention weights
    """
    x = x_ref[...]                                     # (N, E)
    wqkv = wqkv_ref[...]                               # (2K+V, E)

    # Fused QKV projection: contract E of both operands -> consumes the PyTorch-layout
    # weight directly on the MXU (no transpose, single wide matmul).
    qkv = lax.dot_general(
        x, wqkv, (((1,), (1,)), ((), ())),
        preferred_element_type=jnp.float32)            # (N, 2K+V)

    # 1/sqrt(K) is already folded into the Wq rows of wqkv.
    # NOTE: these lane-dim slices are tiny here; at real sizes, verify they don't emit
    # XLU lane realignment (else issue three separate dot_generals against x).
    q = qkv[:, :k_size]                                # (N, K)
    k = qkv[:, k_size:2 * k_size]                      # (N, K)
    v = qkv[:, 2 * k_size:2 * k_size + v_size]         # (N, V)

    # scores = Q @ K^T via direct contraction of the K dim of both operands.
    s = lax.dot_general(
        q, k, (((1,), (1,)), ((), ())),
        preferred_element_type=jnp.float32)            # (N, N)

    # Numerically-stable softmax over the last dim, exact division (rows sum to 1).
    m = jnp.max(s, axis=-1, keepdims=True)
    p = jnp.exp(s - m)
    w = p / jnp.sum(p, axis=-1, keepdims=True)

    a_ref[...] = jnp.dot(w, v, preferred_element_type=jnp.float32).astype(a_ref.dtype)
    w_ref[...] = w.astype(w_ref.dtype)


def make_self_attention(wq, wk, wv):
    """Build a forward fn. wq/wk: (k_size, E); wv: (v_size, E) -- PyTorch Linear layout.

    The fused QKV weight (with the 1/sqrt(K) scale folded into Wq) is built ONCE here,
    not per call.
    """
    k_size, embed = wq.shape
    v_size = wv.shape[0]
    scale = 1.0 / math.sqrt(k_size)
    wqkv = jnp.concatenate([wq * scale, wk, wv], axis=0)   # (2K+V, E), hoisted

    kernel = functools.partial(_self_attention_kernel, k_size=k_size, v_size=v_size)

    @jax.jit
    def forward(x):
        """x: (N, E) like the PyTorch module, or (B, N, E) for a batch of sequences."""
        single = x.ndim == 2
        if single:
            x = x[None]
        b, n, e = x.shape
        assert e == embed

        a, w = pl.pallas_call(
            kernel,
            out_shape=(
                jax.ShapeDtypeStruct((b, n, v_size), jnp.float32),
                jax.ShapeDtypeStruct((b, n, n), jnp.float32),
            ),
            grid=(b,),
            in_specs=[
                # leading batch dim squeezed; one (N, E) sequence per grid step
                pl.BlockSpec((None, n, e), lambda i: (i, 0, 0)),
                # fused weight: same block every step -> stays resident in VMEM
                pl.BlockSpec((2 * k_size + v_size, e), lambda i: (0, 0)),
            ],
            out_specs=(
                pl.BlockSpec((None, n, v_size), lambda i: (i, 0, 0)),
                pl.BlockSpec((None, n, n), lambda i: (i, 0, 0)),
            ),
            compiler_params=pltpu.CompilerParams(
                dimension_semantics=("parallel",)),     # v7x: shard batch over 2 TCs
        )(x, wqkv)

        if single:
            return a[0], w[0]
        return a, w

    return forward


def _reference(x, wq, wk, wv):
    """Pure-JAX reference matching the PyTorch forward exactly (per sequence)."""
    q = x @ wq.T
    k = x @ wk.T
    v = x @ wv.T
    s = (q @ jnp.swapaxes(k, -1, -2)) * (1.0 / math.sqrt(wq.shape[0]))
    w = jax.nn.softmax(s, axis=-1)
    return w @ v, w


if __name__ == "__main__":
    # Shapes implied by the module: 2-D (seq, embed) input; batch several sequences
    # into one kernel call per the performance review.
    batch, seq, embed_size, k_size, v_size = 4, 8, 32, 16, 16

    key = jax.random.PRNGKey(0)
    kx, kq, kk, kv = jax.random.split(key, 4)

    x = jax.random.normal(kx, (batch, seq, embed_size), dtype=jnp.float32)
    # Deterministic "Linear(bias=False)" weights in PyTorch (out, in) layout.
    wq = jax.random.normal(kq, (k_size, embed_size), dtype=jnp.float32) * 0.1
    wk = jax.random.normal(kk, (k_size, embed_size), dtype=jnp.float32) * 0.1
    wv = jax.random.normal(kv, (v_size, embed_size), dtype=jnp.float32) * 0.1

    attn = make_self_attention(wq, wk, wv)

    # Batched path.
    a, w = attn(x)
    jax.block_until_ready((a, w))

    a_ref, w_ref = _reference(x, wq, wk, wv)
    assert a.shape == (batch, seq, v_size) and w.shape == (batch, seq, seq)
    assert jnp.allclose(a, a_ref, atol=1e-4, rtol=1e-4)
    assert jnp.allclose(w, w_ref, atol=1e-4, rtol=1e-4)
    assert jnp.allclose(jnp.sum(w, axis=-1), 1.0, atol=1e-5)

    # Single-sequence path (exact PyTorch forward signature: 2-D input).
    a1, w1 = attn(x[0])
    jax.block_until_ready((a1, w1))
    a1_ref, w1_ref = _reference(x[0], wq, wk, wv)
    assert a1.shape == (seq, v_size) and w1.shape == (seq, seq)
    assert jnp.allclose(a1, a1_ref, atol=1e-4, rtol=1e-4)
    assert jnp.allclose(w1, w1_ref, atol=1e-4, rtol=1e-4)

    print("KERNEL_OK")
</pallas_src>

<mosaic_0001>
module attributes {stable_mosaic.version = 11 : i64} {
  func.func @_self_attention_kernel(%arg0: i32, %arg1: memref<1x8x32xf32, #tpu.memory_space<vmem>>, %arg2: memref<48x32xf32, #tpu.memory_space<vmem>>, %arg3: memref<1x8x16xf32, #tpu.memory_space<vmem>>, %arg4: memref<1x8x8xf32, #tpu.memory_space<vmem>>) attributes {dimension_semantics = [#tpu.dimension_semantics<parallel>], iteration_bounds = array<i64: 4>, scalar_prefetch = 0 : i64, scratch_operands = 0 : i64, tpu.core_type = #tpu.core_type<tc>, window_params = [{transform_indices = @transform_0, window_bounds = array<i64: 1, 8, 32>}, {pipeline_mode = #tpu.pipeline_mode<synchronous>, transform_indices = @transform_1, window_bounds = array<i64: 48, 32>}, {transform_indices = @transform_2, window_bounds = array<i64: 1, 8, 16>}, {transform_indices = @transform_3, window_bounds = array<i64: 1, 8, 8>}]} {
    %c0 = arith.constant 0 : index
    %c0_0 = arith.constant 0 : index
    %c0_1 = arith.constant 0 : index
    %0 = vector.load %arg1[%c0, %c0_0, %c0_1] : memref<1x8x32xf32, #tpu.memory_space<vmem>>, vector<1x8x32xf32>
    %1 = vector.shape_cast %0 : vector<1x8x32xf32> to vector<8x32xf32>
    %c0_2 = arith.constant 0 : index
    %c0_3 = arith.constant 0 : index
    %2 = vector.load %arg2[%c0_2, %c0_3] : memref<48x32xf32, #tpu.memory_space<vmem>>, vector<48x32xf32>
    %cst = arith.constant dense<0.000000e+00> : vector<8x48xf32>
    %3 = tpu.matmul %1, %2, %cst {dimension_numbers = #tpu.dot_dimension_numbers<[1], [1], [0], [0], [0, 0, 1, 0], [], []>} : vector<8x32xf32>, vector<48x32xf32>, vector<8x48xf32> -> vector<8x48xf32>
    %4 = vector.extract_strided_slice %3 {offsets = [0, 0], sizes = [8, 16], strides = [1, 1]} : vector<8x48xf32> to vector<8x16xf32>
    %5 = vector.extract_strided_slice %3 {offsets = [0, 16], sizes = [8, 16], strides = [1, 1]} : vector<8x48xf32> to vector<8x16xf32>
    %6 = vector.extract_strided_slice %3 {offsets = [0, 32], sizes = [8, 16], strides = [1, 1]} : vector<8x48xf32> to vector<8x16xf32>
    %cst_4 = arith.constant dense<0.000000e+00> : vector<8x8xf32>
    %7 = tpu.matmul %4, %5, %cst_4 {dimension_numbers = #tpu.dot_dimension_numbers<[1], [1], [0], [0], [0, 0, 1, 0], [], []>} : vector<8x16xf32>, vector<8x16xf32>, vector<8x8xf32> -> vector<8x8xf32>
    %cst_5 = arith.constant dense<0xFF800000> : vector<8xf32>
    %8 = vector.multi_reduction <maximumf>, %7, %cst_5 [1] : vector<8x8xf32> to vector<8xf32>
    %9 = vector.shape_cast %8 : vector<8xf32> to vector<8x1xf32>
    %10 = vector.broadcast %9 : vector<8x1xf32> to vector<8x8xf32>
    %11 = arith.subf %7, %10 : vector<8x8xf32>
    %12 = math.exp %11 : vector<8x8xf32>
    %cst_6 = arith.constant dense<0.000000e+00> : vector<8xf32>
    %13 = vector.multi_reduction <add>, %12, %cst_6 [1] : vector<8x8xf32> to vector<8xf32>
    %14 = vector.shape_cast %13 : vector<8xf32> to vector<8x1xf32>
    %15 = vector.broadcast %14 : vector<8x1xf32> to vector<8x8xf32>
    %16 = arith.divf %12, %15 : vector<8x8xf32>
    %cst_7 = arith.constant dense<0.000000e+00> : vector<8x16xf32>
    %17 = tpu.matmul %16, %6, %cst_7 {dimension_numbers = #tpu.dot_dimension_numbers<[1], [0], [0], [1], [0, 0, 1, 1], [], []>} : vector<8x8xf32>, vector<8x16xf32>, vector<8x16xf32> -> vector<8x16xf32>
    %c0_8 = arith.constant 0 : index
    %c0_9 = arith.constant 0 : index
    %c0_10 = arith.constant 0 : index
    %18 = vector.load %arg3[%c0_8, %c0_9, %c0_10] : memref<1x8x16xf32, #tpu.memory_space<vmem>>, vector<1x8x16xf32>
    %19 = vector.shape_cast %18 : vector<1x8x16xf32> to vector<8x16xf32>
    %20 = vector.shape_cast %17 : vector<8x16xf32> to vector<1x8x16xf32>
    tpu.vector_store %arg3[%c0_8, %c0_9, %c0_10], %20 {strides = array<i32>} : memref<1x8x16xf32, #tpu.memory_space<vmem>>, vector<1x8x16xf32>,
    %c0_11 = arith.constant 0 : index
    %c0_12 = arith.constant 0 : index
    %c0_13 = arith.constant 0 : index
    %21 = vector.load %arg4[%c0_11, %c0_12, %c0_13] : memref<1x8x8xf32, #tpu.memory_space<vmem>>, vector<1x8x8xf32>
    %22 = vector.shape_cast %21 : vector<1x8x8xf32> to vector<8x8xf32>
    %23 = vector.shape_cast %16 : vector<8x8xf32> to vector<1x8x8xf32>
    tpu.vector_store %arg4[%c0_11, %c0_12, %c0_13], %23 {strides = array<i32>} : memref<1x8x8xf32, #tpu.memory_space<vmem>>, vector<1x8x8xf32>,
    return
  }
  func.func @transform_0(%arg0: i32) -> (i32, i32, i32) {
    %c0_i32 = arith.constant 0 : i32
    %c0_i32_0 = arith.constant 0 : i32
    %c0_i32_1 = arith.constant 0 : i32
    return %arg0, %c0_i32, %c0_i32_0 : i32, i32, i32
  }
  func.func @transform_1(%arg0: i32) -> (i32, i32) {
    %c0_i32 = arith.constant 0 : i32
    %c0_i32_0 = arith.constant 0 : i32
    %c0_i32_1 = arith.constant 0 : i32
    return %c0_i32, %c0_i32_0 : i32, i32
  }
  func.func @transform_2(%arg0: i32) -> (i32, i32, i32) {
    %c0_i32 = arith.constant 0 : i32
    %c0_i32_0 = arith.constant 0 : i32
    %c0_i32_1 = arith.constant 0 : i32
    return %arg0, %c0_i32, %c0_i32_0 : i32, i32, i32
  }
  func.func @transform_3(%arg0: i32) -> (i32, i32, i32) {
    %c0_i32 = arith.constant 0 : i32
    %c0_i32_0 = arith.constant 0 : i32
    %c0_i32_1 = arith.constant 0 : i32
    return %arg0, %c0_i32, %c0_i32_0 : i32, i32, i32
  }
}

</mosaic_0001>

<llo_original>
// kernel: forward.1
$region0: #{forward.1}
  #allocation0 [shape = 'u32[]', space=smem, size = 0x4, offset = 0x4, fixed_abs, tag = 'smem constant byte address 0x4 - core index']
  #allocation1 [shape = 'u32[144,128]{1,0:T(1,128)}', space=vmem, size = 0x12000, scoped, tag = 'internal scratch']
  %s0 = inlined_call_operand.hbm [shape: f32[4,8,32], index: 0, kind: input, shape index: {}]
  %s1 = inlined_call_operand.hbm [shape: f32[48,32], index: 1, kind: input, shape index: {}]
  %s2 = inlined_call_operand.hbm [shape: f32[4,8,16], index: 2, kind: output, shape index: {0}]
  %s3 = inlined_call_operand.hbm [shape: f32[4,8,8], index: 3, kind: output, shape index: {1}]
  %4 = xla_tuple %s2, %s3
  %s5 = sld [smem:[#allocation0]]
  $region57: #{forward.1} parent=0
    _
  %s7 = ssub.s32 1, %s5
  %s8 = scalar_select 0, %s7, %s5
  $region1: #{forward.1} parent=0
    #allocation2 [shape = 'u8[8192]{0}', space=vmem, size = 0x2000, scoped, tag = 'input window, operand 0']
    #allocation3 [shape = 's32[2]{0}', space=sflag, size = 0x8, scoped, tag = 'scoped memory for forward.1']
    #allocation4 [shape = 's32[2]{0}', space=sflag, size = 0x8, scoped, tag = 'scoped memory for forward.1']
    #allocation5 [shape = 'u8[24576]{0}', space=vmem, size = 0x6000, scoped, tag = 'input window, operand 1, single buffered']
    #allocation6 [shape = 's32[1]{0}', space=sflag, size = 0x4, scoped, tag = 'scoped memory for forward.1']
    #allocation7 [shape = 'u8[8192]{0}', space=vmem, size = 0x2000, scoped, tag = 'output window, operand 0']
    #allocation8 [shape = 'u8[8192]{0}', space=vmem, size = 0x2000, scoped, tag = 'output window, operand 1']
    #allocation9 [shape = 's32[2]{0}', space=sflag, size = 0x8, scoped, tag = 'scoped memory for forward.1']
    %9 = vsyncpa [#allocation3], 0
    %s10 = scalar_lea.sflag [#allocation3], 1
    %11 = vsyncpa %s10, 0
    %12 = vsyncpa [#allocation6], 0
    %13 = vsyncpa [#allocation4], 0
    %s14 = scalar_lea.sflag [#allocation4], 1
    %15 = vsyncpa %s14, 0
    %16 = vsyncpa [#allocation9], 0
    %s17 = scalar_lea.sflag [#allocation9], 1
    %18 = vsyncpa %s17, 0
    loop: start=0, step=1, limit=6
    $region2: #{forward.1} parent=1 // loop_pre_header
      _
    $region3: #{forward.1} parent=1 // loop_header
      %s20 = sphi 0, %s24
      %p21 = scmp.ge.s32.totalorder %s20, 6
      %s30 = sphi 0, %s32
      %s33 = sphi 0, %s30
      %s34 = sphi 0, %s33
      %s50 = sphi 0, %s34
      %s54 = sphi 0, %s54
      %s56 = sphi 0, %s54
      %s57 = sphi 0, %s56
      %s71 = sphi 0, %s57
      %s77 = sphi 0, %s79
      %s80 = sphi 0, %s77
      %s81 = sphi 0, %s80
      %s97 = sphi 0, %s81
      %s103 = sphi 0, %s105
      %s106 = sphi 0, %s103
      %s107 = sphi 0, %s106
      %s123 = sphi 0, %s107
    $region4: #{forward.1} parent=1 // loop_header_branch
      %23 = sbr.rel (%p21) target = $region8
    $region5: #{forward.1} parent=1 // loop_body
      %s25 = ssub.s32 %s20, 1
      %s26 = ssub.s32 %s20, 2
      %s27 = sadd.s32 %s20, 1
      %s28 = ssub.s32 %s20, %s27
      %p29 = scmp.eq.s32.totalorder %s28, 0
      %s31 = sadd.s32 %s30, 1
      %s32 = scalar_select %p29, %s30, %s31
      %p35 = pneg %p29
      %p36 = scmp.eq.s32.totalorder %s20, 3
      %p37 = por %p35, %p36
      %p38 = scmp.ne.s32.totalorder %s30, %s33
      %p39 = scmp.eq.s32.totalorder %s20, 0
      %p40 = por %p38, %p39
      %p41 = scmp.ne.s32.totalorder %s30, %s33
      %p42 = scmp.eq.s32.totalorder %s25, 3
      %p43 = por %p41, %p42
      %p44 = scmp.ne.s32.totalorder %s33, %s34
      %p45 = scmp.eq.s32.totalorder %s25, 0
      %p46 = por %p44, %p45
      %p47 = scmp.ne.s32.totalorder %s33, %s34
      %p48 = scmp.eq.s32.totalorder %s26, 3
      %p49 = por %p47, %p48
      %p51 = scmp.ne.s32.totalorder %s34, %s50
      %p52 = scmp.eq.s32.totalorder %s26, 0
      %p53 = por %p51, %p52
      %s55 = sadd.s32 %s54, 1
      %p58 = scmp.eq.s32.totalorder %s20, 3
      %p59 = scmp.ne.s32.totalorder %s54, %s56
      %p60 = scmp.eq.s32.totalorder %s20, 0
      %p61 = por %p59, %p60
      %p62 = scmp.ne.s32.totalorder %s54, %s56
      %p63 = scmp.eq.s32.totalorder %s25, 3
      %p64 = por %p62, %p63
      %p65 = scmp.ne.s32.totalorder %s56, %s57
      %p66 = scmp.eq.s32.totalorder %s25, 0
      %p67 = por %p65, %p66
      %p68 = scmp.ne.s32.totalorder %s56, %s57
      %p69 = scmp.eq.s32.totalorder %s26, 3
      %p70 = por %p68, %p69
      %p72 = scmp.ne.s32.totalorder %s57, %s71
      %p73 = scmp.eq.s32.totalorder %s26, 0
      %p74 = por %p72, %p73
      %s75 = ssub.s32 %s20, %s27
      %p76 = scmp.eq.s32.totalorder %s75, 0
      %s78 = sadd.s32 %s77, 1
      %s79 = scalar_select %p76, %s77, %s78
      %p82 = pneg %p76
      %p83 = scmp.eq.s32.totalorder %s20, 3
      %p84 = por %p82, %p83
      %p85 = scmp.ne.s32.totalorder %s77, %s80
      %p86 = scmp.eq.s32.totalorder %s20, 0
      %p87 = por %p85, %p86
      %p88 = scmp.ne.s32.totalorder %s77, %s80
      %p89 = scmp.eq.s32.totalorder %s25, 3
      %p90 = por %p88, %p89
      %p91 = scmp.ne.s32.totalorder %s80, %s81
      %p92 = scmp.eq.s32.totalorder %s25, 0
      %p93 = por %p91, %p92
      %p94 = scmp.ne.s32.totalorder %s80, %s81
      %p95 = scmp.eq.s32.totalorder %s26, 3
      %p96 = por %p94, %p95
      %p98 = scmp.ne.s32.totalorder %s81, %s97
      %p99 = scmp.eq.s32.totalorder %s26, 0
      %p100 = por %p98, %p99
      %s101 = ssub.s32 %s20, %s27
      %p102 = scmp.eq.s32.totalorder %s101, 0
      %s104 = sadd.s32 %s103, 1
      %s105 = scalar_select %p102, %s103, %s104
      %p108 = pneg %p102
      %p109 = scmp.eq.s32.totalorder %s20, 3
      %p110 = por %p108, %p109
      %p111 = scmp.ne.s32.totalorder %s103, %s106
      %p112 = scmp.eq.s32.totalorder %s20, 0
      %p113 = por %p111, %p112
      %p114 = scmp.ne.s32.totalorder %s103, %s106
      %p115 = scmp.eq.s32.totalorder %s25, 3
      %p116 = por %p114, %p115
      %p117 = scmp.ne.s32.totalorder %s106, %s107
      %p118 = scmp.eq.s32.totalorder %s25, 0
      %p119 = por %p117, %p118
      %p120 = scmp.ne.s32.totalorder %s106, %s107
      %p121 = scmp.eq.s32.totalorder %s26, 3
      %p122 = por %p120, %p121
      %p124 = scmp.ne.s32.totalorder %s107, %s123
      %p125 = scmp.eq.s32.totalorder %s26, 0
      %p126 = por %p124, %p125
      %p127 = scmp.le.s32.totalorder 1, %s20
      %p128 = scmp.lt.s32.totalorder %s20, 5
      %p129 = pnand %p127, %p128
      %p130 = pneg %p129
      // Predicated region
      $region9: #{forward.1} parent=5 // pred_check
        _
      $region10: #{forward.1} parent=5 // pred_check_branch
        %132 = sbr.rel (%p129) target = $region12
      $region11: #{forward.1} parent=5 // pred_region
        %s133 = ssub.s32 %s20, 1
        // Predicated region
        $region13: #{forward.1} parent=11 // pred_check
          %p134 = pneg %p67
        $region14: #{forward.1} parent=11 // pred_check_branch
          %136 = sbr.rel (%p134) target = $region16
        $region15: #{forward.1} parent=11 // pred_region
          %s138 = ssub.s32 768, 768
          %139 = vsyncadd [#allocation6], %s138
          %s140 = sshll.u32 [#allocation5], 4
          %s141 = int_to_ptr.vmem [resolvable:$true] %s140
          %146 = dma.hbm_to_vmem [thread:$0]  %s1, 768, %s141, [#allocation6], 128, 128, 8
        $region16: #{forward.1} parent=11 // pred_fallthru
          _
      $region12: #{forward.1} parent=5 // pred_fallthru
        _
      %p147 = scmp.lt.s32.totalorder %s20, 4
      // Predicated region
      $region17: #{forward.1} parent=5 // pred_check
        %p148 = pneg %p147
      $region18: #{forward.1} parent=5 // pred_check_branch
        %150 = sbr.rel (%p148) target = $region20
      $region19: #{forward.1} parent=5 // pred_region
        // Predicated region
        $region21: #{forward.1} parent=19 // pred_check
          %p151 = pneg %p40
        $region22: #{forward.1} parent=19 // pred_check_branch
          %153 = sbr.rel (%p151) target = $region24
        $region23: #{forward.1} parent=19 // pred_region
          %s154 = sand.u32 %s30, 1
          %s155 = scalar_lea.sflag [#allocation3], %s154
          %s156 = sand.u32 %s30, 1
          %s157 = smul.addr %s156, 8
          %s158 = scalar_lea.vmem [#allocation2], %s157
          %s160 = ssub.s32 128, 128
          %161 = vsyncadd %s155, %s160
          %s162 = smul.addr %s20, 128
          %s163 = scalar_lea.hbm %s0, %s162
          %s165 = sshll.u32 %s158, 4
          %s166 = int_to_ptr.vmem [resolvable:$true] %s165
          %168 = dma.hbm_to_vmem [thread:$0]  %s163, 128, %s166, %s155
        $region24: #{forward.1} parent=19 // pred_fallthru
          _
      $region20: #{forward.1} parent=5 // pred_fallthru
        _
      %p169 = scmp.le.s32.totalorder 1, %s20
      %p170 = scmp.lt.s32.totalorder %s20, 5
      %p171 = pnand %p169, %p170
      %p172 = pneg %p171
      // Predicated region
      $region25: #{forward.1} parent=5 // pred_check
        _
      $region26: #{forward.1} parent=5 // pred_check_branch
        %174 = sbr.rel (%p171) target = $region28
      $region27: #{forward.1} parent=5 // pred_region
        %s175 = ssub.s32 %s20, 1
        %s176 = sand.u32 %s33, 1
        %s177 = scalar_lea.sflag [#allocation3], %s176
        %s178 = sand.u32 %s33, 1
        %s179 = smul.addr %s178, 8
        %s180 = scalar_lea.vmem [#allocation2], %s179
        // Predicated region
        $region29: #{forward.1} parent=27 // pred_check
          %p181 = pneg %p46
        $region30: #{forward.1} parent=27 // pred_check_branch
          %183 = sbr.rel (%p181) target = $region32
        $region31: #{forward.1} parent=27 // pred_region
          %184 = dma.done %s177, 128
        $region32: #{forward.1} parent=27 // pred_fallthru
          _
        // Predicated region
        $region33: #{forward.1} parent=27 // pred_check
          %p185 = pneg %p67
        $region34: #{forward.1} parent=27 // pred_check_branch
          %187 = sbr.rel (%p185) target = $region36
        $region35: #{forward.1} parent=27 // pred_region
          %188 = dma.done [#allocation6], 768
        $region36: #{forward.1} parent=27 // pred_fallthru
          _
        %s189 = sand.u32 %s33, 1
        %s190 = scalar_lea.sflag [#allocation3], %s189
        %s191 = sand.u32 %s33, 1
        %s192 = smul.addr %s191, 8
        %s193 = scalar_lea.vmem [#allocation2], %s192
        %p194 = pneg %p46
        %p195 = pneg %p43
        %p196 = pneg %p67
        %p197 = pneg %p64
        %p198 = pneg %p93
        %p199 = pneg %p90
        %s200 = sand.u32 %s80, 1
        %s201 = scalar_lea.sflag [#allocation4], %s200
        %s202 = sand.u32 %s80, 1
        %s203 = smul.addr %s202, 8
        %s204 = scalar_lea.vmem [#allocation7], %s203
        %p205 = pneg %p119
        %p206 = pneg %p116
        %s207 = sand.u32 %s106, 1
        %s208 = scalar_lea.sflag [#allocation9], %s207
        %s209 = sand.u32 %s106, 1
        %s210 = smul.addr %s209, 8
        %s211 = scalar_lea.vmem [#allocation8], %s210
        %v212 = vld [vmem:[%s180] sm:$0xff]
        %v213 = vld [vmem:[#allocation5] sm:$0xff]
        %v214 = vld [vmem:[#allocation5 + $0x8] sm:$0xff]
        %v215 = vld [vmem:[#allocation5 + $0x10] sm:$0xff]
        %v216 = vld [vmem:[#allocation5 + $0x18] sm:$0xff]
        %v217 = vld [vmem:[#allocation5 + $0x20] sm:$0xff]
        %v218 = vld [vmem:[#allocation5 + $0x28] sm:$0xff]
        %vm219 = vcmask 261120
        %v221 = vsel %vm219, %v212, 0
        %v224 = vsel %vm219, %v213, 0
        %v227 = vsel %vm219, %v214, 0
        %v230 = vsel %vm219, %v215, 0
        %v233 = vsel %vm219, %v216, 0
        %v236 = vsel %vm219, %v217, 0
        %v239 = vsel %vm219, %v218, 0
        %241 = vmatprep.subr.mxu0 0.0
        %242 = vmatpush1.xpose.msra.mxu0 0.0
        %243 = vmatprep.subr.mxu0 0.0
        %244 = vmatpush1.xpose.msra.mxu0 0.0
        %245 = vmatprep.subr.mxu0 0.0
        %246 = vmatpush1.xpose.msra.mxu0 0.0
        %247 = vmatprep.subr.mxu0 0.0
        %248 = vmatpush1.xpose.msra.mxu0 0.0
        %249 = vmatprep.subr.mxu0 0.0
        %250 = vmatpush1.xpose.msra.mxu0 0.0
        %251 = vmatprep.subr.mxu0 0.0
        %252 = vmatpush1.xpose.msra.mxu0 0.0
        %253 = vmatprep.subr.mxu0 0.0
        %254 = vmatpush1.xpose.msra.mxu0 0.0
        %255 = vmatprep.subr.mxu0 0.0
        %256 = vmatpush1.xpose.msra.mxu0 0.0
        %257 = vmatprep.subr.mxu0 0.0
        %258 = vmatpush1.xpose.msra.mxu0 0.0
        %259 = vmatprep.subr.mxu0 0.0
        %260 = vmatpush1.xpose.msra.mxu0 0.0
        %261 = vmatprep.subr.mxu0 0.0
        %262 = vmatpush1.xpose.msra.mxu0 %v239
        %263 = vmatprep.subr.mxu0 0.0
        %264 = vmatpush1.xpose.msra.mxu0 %v236
        %265 = vmatprep.subr.mxu0 0.0
        %266 = vmatpush1.xpose.msra.mxu0 %v233
        %267 = vmatprep.subr.mxu0 0.0
        %268 = vmatpush1.xpose.msra.mxu0 %v230
        %269 = vmatprep.subr.mxu0 0.0
        %270 = vmatpush1.xpose.msra.mxu0 %v227
        %271 = vmatprep.subr.mxu0 0.0
        %272 = vmatpush1.xpose.msra.mxu0 %v224
        %273 = vmatprep.subr.mxu0 0.0
        %274 = vmatpush2.xpose.msra.mxu0 0.0
        %275 = vmatprep.subr.mxu0 0.0
        %276 = vmatpush2.xpose.msra.mxu0 0.0
        %277 = vmatprep.subr.mxu0 0.0
        %278 = vmatpush2.xpose.msra.mxu0 0.0
        %279 = vmatprep.subr.mxu0 0.0
        %280 = vmatpush2.xpose.msra.mxu0 0.0
        %281 = vmatprep.subr.mxu0 0.0
        %282 = vmatpush2.xpose.msra.mxu0 0.0
        %283 = vmatprep.subr.mxu0 0.0
        %284 = vmatpush2.xpose.msra.mxu0 0.0
        %285 = vmatprep.subr.mxu0 0.0
        %286 = vmatpush2.xpose.msra.mxu0 0.0
        %287 = vmatprep.subr.mxu0 0.0
        %288 = vmatpush2.xpose.msra.mxu0 0.0
        %289 = vmatprep.subr.mxu0 0.0
        %290 = vmatpush2.xpose.msra.mxu0 0.0
        %291 = vmatprep.subr.mxu0 0.0
        %292 = vmatpush2.xpose.msra.mxu0 0.0
        %293 = vmatprep.subr.mxu0 0.0
        %294 = vmatpush2.xpose.msra.mxu0 0.0
        %295 = vmatprep.subr.mxu0 0.0
        %296 = vmatpush2.xpose.msra.mxu0 0.0
        %297 = vmatprep.subr.mxu0 0.0
        %298 = vmatpush2.xpose.msra.mxu0 0.0
        %299 = vmatprep.subr.mxu0 0.0
        %300 = vmatpush2.xpose.msra.mxu0 0.0
        %301 = vmatprep.subr.mxu0 0.0
        %302 = vmatpush2.xpose.msra.mxu0 0.0
        %303 = vmatprep.subr.mxu0 0.0
        %304 = vmatpush2.xpose.msra.mxu0 0.0
        %305 = vmatprep.mubr.f32.mxu0 0.0
        %306 = vmatmul.mubr.f32.gmra.mxu0 %v221
        %v307 = vpop.f32.mrf.mxu0
        %v308 = vadd.f32 0.0, %v307
        %v309 = vpop.f32.mrf.mxu0
        %310 = vdwg.mxu0
        %312 = vrot.lane.b32.xlu0 %v308, 112
        %v313 = vpop.permute.xlu0 %312
        %vm314 = vcmask 130048
        %v315 = vsel %vm314, %v308, 0
        %v317 = vsel %vm314, %v313, 0
        %319 = vmatprep.subr.mxu0 0.0
        %320 = vmatpush1.xpose.msra.mxu0 0.0
        %321 = vmatprep.subr.mxu0 0.0
        %322 = vmatpush1.xpose.msra.mxu0 0.0
        %323 = vmatprep.subr.mxu0 0.0
        %324 = vmatpush1.xpose.msra.mxu0 0.0
        %325 = vmatprep.subr.mxu0 0.0
        %326 = vmatpush1.xpose.msra.mxu0 0.0
        %327 = vmatprep.subr.mxu0 0.0
        %328 = vmatpush1.xpose.msra.mxu0 0.0
        %329 = vmatprep.subr.mxu0 0.0
        %330 = vmatpush1.xpose.msra.mxu0 0.0
        %331 = vmatprep.subr.mxu0 0.0
        %332 = vmatpush1.xpose.msra.mxu0 0.0
        %333 = vmatprep.subr.mxu0 0.0
        %334 = vmatpush1.xpose.msra.mxu0 0.0
        %335 = vmatprep.subr.mxu0 0.0
        %336 = vmatpush1.xpose.msra.mxu0 0.0
        %337 = vmatprep.subr.mxu0 0.0
        %338 = vmatpush1.xpose.msra.mxu0 0.0
        %339 = vmatprep.subr.mxu0 0.0
        %340 = vmatpush1.xpose.msra.mxu0 0.0
        %341 = vmatprep.subr.mxu0 0.0
        %342 = vmatpush1.xpose.msra.mxu0 0.0
        %343 = vmatprep.subr.mxu0 0.0
        %344 = vmatpush1.xpose.msra.mxu0 0.0
        %345 = vmatprep.subr.mxu0 0.0
        %346 = vmatpush1.xpose.msra.mxu0 0.0
        %347 = vmatprep.subr.mxu0 0.0
        %348 = vmatpush1.xpose.msra.mxu0 0.0
        %349 = vmatprep.subr.mxu0 0.0
        %350 = vmatpush1.xpose.msra.mxu0 %v317
        %351 = vmatprep.subr.mxu0 0.0
        %352 = vmatpush2.xpose.msra.mxu0 0.0
        %353 = vmatprep.subr.mxu0 0.0
        %354 = vmatpush2.xpose.msra.mxu0 0.0
        %355 = vmatprep.subr.mxu0 0.0
        %356 = vmatpush2.xpose.msra.mxu0 0.0
        %357 = vmatprep.subr.mxu0 0.0
        %358 = vmatpush2.xpose.msra.mxu0 0.0
        %359 = vmatprep.subr.mxu0 0.0
        %360 = vmatpush2.xpose.msra.mxu0 0.0
        %361 = vmatprep.subr.mxu0 0.0
        %362 = vmatpush2.xpose.msra.mxu0 0.0
        %363 = vmatprep.subr.mxu0 0.0
        %364 = vmatpush2.xpose.msra.mxu0 0.0
        %365 = vmatprep.subr.mxu0 0.0
        %366 = vmatpush2.xpose.msra.mxu0 0.0
        %367 = vmatprep.subr.mxu0 0.0
        %368 = vmatpush2.xpose.msra.mxu0 0.0
        %369 = vmatprep.subr.mxu0 0.0
        %370 = vmatpush2.xpose.msra.mxu0 0.0
        %371 = vmatprep.subr.mxu0 0.0
        %372 = vmatpush2.xpose.msra.mxu0 0.0
        %373 = vmatprep.subr.mxu0 0.0
        %374 = vmatpush2.xpose.msra.mxu0 0.0
        %375 = vmatprep.subr.mxu0 0.0
        %376 = vmatpush2.xpose.msra.mxu0 0.0
        %377 = vmatprep.subr.mxu0 0.0
        %378 = vmatpush2.xpose.msra.mxu0 0.0
        %379 = vmatprep.subr.mxu0 0.0
        %380 = vmatpush2.xpose.msra.mxu0 0.0
        %381 = vmatprep.subr.mxu0 0.0
        %382 = vmatpush2.xpose.msra.mxu0 0.0
        %383 = vmatprep.mubr.f32.mxu0 0.0
        %384 = vmatmul.mubr.f32.gmra.mxu0 %v315
        %v385 = vpop.f32.mrf.mxu0
        %v386 = vadd.f32 0.0, %v385
        %v387 = vpop.f32.mrf.mxu0
        %388 = vdwg.mxu0
        %vm389 = vcmask 64512
        %v390 = vsel %vm389, %v386, -inf
        %391 = vmax.xlane.f32.xlu0 %v390
        %v392 = vpop.xlane.xlu0 %391
        %v393 = vsub.f32 %v386, %v392
        %v394 = vmul.f32 %v393, 1.442695
        %v395 = vpow.pop %v394
        %v396 = vsel %vm389, %v395, 0.0
        %397 = vadd.xlane.f32.xlu0 %v396
        %v398 = vpop.xlane.xlu0 %397
        %v399 = vrcp.pop %v398
        %v400 = vmul.f32 %v395, %v399
        %401 = vrot.lane.b32.xlu0 %v308, 96
        %v402 = vpop.permute.xlu0 %401
        %v405 = vsel %vm389, %v400, 0
        %407 = vmatprep.subr.mxu0 0.0
        %408 = vmatpush1.msra.mxu0 0.0
        %409 = vmatprep.subr.mxu0 0.0
        %410 = vmatpush1.msra.mxu0 0.0
        %411 = vmatprep.subr.mxu0 0.0
        %412 = vmatpush1.msra.mxu0 0.0
        %413 = vmatprep.subr.mxu0 0.0
        %414 = vmatpush1.msra.mxu0 0.0
        %415 = vmatprep.subr.mxu0 0.0
        %416 = vmatpush1.msra.mxu0 0.0
        %417 = vmatprep.subr.mxu0 0.0
        %418 = vmatpush1.msra.mxu0 0.0
        %419 = vmatprep.subr.mxu0 0.0
        %420 = vmatpush1.msra.mxu0 0.0
        %421 = vmatprep.subr.mxu0 0.0
        %422 = vmatpush1.msra.mxu0 0.0
        %423 = vmatprep.subr.mxu0 0.0
        %424 = vmatpush1.msra.mxu0 0.0
        %425 = vmatprep.subr.mxu0 0.0
        %426 = vmatpush1.msra.mxu0 0.0
        %427 = vmatprep.subr.mxu0 0.0
        %428 = vmatpush1.msra.mxu0 0.0
        %429 = vmatprep.subr.mxu0 0.0
        %430 = vmatpush1.msra.mxu0 0.0
        %431 = vmatprep.subr.mxu0 0.0
        %432 = vmatpush1.msra.mxu0 0.0
        %433 = vmatprep.subr.mxu0 0.0
        %434 = vmatpush1.msra.mxu0 0.0
        %435 = vmatprep.subr.mxu0 0.0
        %436 = vmatpush1.msra.mxu0 0.0
        %437 = vmatprep.subr.mxu0 0.0
        %438 = vmatpush1.msra.mxu0 %v402
        %439 = vmatprep.subr.mxu0 0.0
        %440 = vmatpush2.msra.mxu0 0.0
        %441 = vmatprep.subr.mxu0 0.0
        %442 = vmatpush2.msra.mxu0 0.0
        %443 = vmatprep.subr.mxu0 0.0
        %444 = vmatpush2.msra.mxu0 0.0
        %445 = vmatprep.subr.mxu0 0.0
        %446 = vmatpush2.msra.mxu0 0.0
        %447 = vmatprep.subr.mxu0 0.0
        %448 = vmatpush2.msra.mxu0 0.0
        %449 = vmatprep.subr.mxu0 0.0
        %450 = vmatpush2.msra.mxu0 0.0
        %451 = vmatprep.subr.mxu0 0.0
        %452 = vmatpush2.msra.mxu0 0.0
        %453 = vmatprep.subr.mxu0 0.0
        %454 = vmatpush2.msra.mxu0 0.0
        %455 = vmatprep.subr.mxu0 0.0
        %456 = vmatpush2.msra.mxu0 0.0
        %457 = vmatprep.subr.mxu0 0.0
        %458 = vmatpush2.msra.mxu0 0.0
        %459 = vmatprep.subr.mxu0 0.0
        %460 = vmatpush2.msra.mxu0 0.0
        %461 = vmatprep.subr.mxu0 0.0
        %462 = vmatpush2.msra.mxu0 0.0
        %463 = vmatprep.subr.mxu0 0.0
        %464 = vmatpush2.msra.mxu0 0.0
        %465 = vmatprep.subr.mxu0 0.0
        %466 = vmatpush2.msra.mxu0 0.0
        %467 = vmatprep.subr.mxu0 0.0
        %468 = vmatpush2.msra.mxu0 0.0
        %469 = vmatprep.subr.mxu0 0.0
        %470 = vmatpush2.msra.mxu0 0.0
        %471 = vmatprep.mubr.f32.mxu0 0.0
        %472 = vmatmul.mubr.f32.gmra.mxu0 %v405
        %v473 = vpop.f32.mrf.mxu0
        %v474 = vadd.f32 0.0, %v473
        %v475 = vpop.f32.mrf.mxu0
        %476 = vdwg.mxu0
        %477 = vst.msk [vmem:[%s204] sm:$0xff] %vm314, %v474
        %478 = vst.msk [vmem:[%s211] sm:$0xff] %vm389, %v400
        %s479 = sand.u32 %s80, 1
        %s480 = scalar_lea.sflag [#allocation4], %s479
        %s481 = sand.u32 %s80, 1
        %s482 = smul.addr %s481, 8
        %s483 = scalar_lea.vmem [#allocation7], %s482
        %s484 = sand.u32 %s106, 1
        %s485 = scalar_lea.sflag [#allocation9], %s484
        %s486 = sand.u32 %s106, 1
        %s487 = smul.addr %s486, 8
        %s488 = scalar_lea.vmem [#allocation8], %s487
        // Predicated region
        $region37: #{forward.1} parent=27 // pred_check
          %p489 = pneg %p90
        $region38: #{forward.1} parent=27 // pred_check_branch
          %491 = sbr.rel (%p489) target = $region40
        $region39: #{forward.1} parent=27 // pred_region
          %s493 = ssub.s32 128, 128
          %494 = vsyncadd %s480, %s493
          %s495 = smul.addr %s25, 128
          %s496 = scalar_lea.hbm %s2, %s495
          %s498 = sshll.u32 %s483, 4
          %s499 = int_to_ptr.vmem [resolvable:$true] %s498
          %501 = dma.vmem_to_hbm [thread:$0]  %s499, 128, %s496, %s480
        $region40: #{forward.1} parent=27 // pred_fallthru
          _
        // Predicated region
        $region41: #{forward.1} parent=27 // pred_check
          %p502 = pneg %p116
        $region42: #{forward.1} parent=27 // pred_check_branch
          %504 = sbr.rel (%p502) target = $region44
        $region43: #{forward.1} parent=27 // pred_region
          %s506 = ssub.s32 128, 128
          %507 = vsyncadd %s485, %s506
          %s508 = smul.addr %s25, 128
          %s509 = scalar_lea.hbm %s3, %s508
          %s511 = sshll.u32 %s488, 4
          %s512 = int_to_ptr.vmem [resolvable:$true] %s511
          %514 = dma.vmem_to_hbm [thread:$0]  %s512, 128, %s509, %s485
        $region44: #{forward.1} parent=27 // pred_fallthru
          _
      $region28: #{forward.1} parent=5 // pred_fallthru
        _
      %p515 = scmp.le.s32.totalorder 2, %s20
      // Predicated region
      $region45: #{forward.1} parent=5 // pred_check
        %p516 = pneg %p515
      $region46: #{forward.1} parent=5 // pred_check_branch
        %518 = sbr.rel (%p516) target = $region48
      $region47: #{forward.1} parent=5 // pred_region
        %s519 = ssub.s32 %s20, 2
        // Predicated region
        $region49: #{forward.1} parent=47 // pred_check
          %p520 = pneg %p96
        $region50: #{forward.1} parent=47 // pred_check_branch
          %522 = sbr.rel (%p520) target = $region52
        $region51: #{forward.1} parent=47 // pred_region
          %s523 = sand.u32 %s81, 1
          %s524 = scalar_lea.sflag [#allocation4], %s523
          %s525 = sand.u32 %s81, 1
          %s526 = smul.addr %s525, 8
          %s527 = scalar_lea.vmem [#allocation7], %s526
          %528 = dma.done %s524, 128
        $region52: #{forward.1} parent=47 // pred_fallthru
          _
        // Predicated region
        $region53: #{forward.1} parent=47 // pred_check
          %p529 = pneg %p122
        $region54: #{forward.1} parent=47 // pred_check_branch
          %531 = sbr.rel (%p529) target = $region56
        $region55: #{forward.1} parent=47 // pred_region
          %s532 = sand.u32 %s107, 1
          %s533 = scalar_lea.sflag [#allocation9], %s532
          %s534 = sand.u32 %s107, 1
          %s535 = smul.addr %s534, 8
          %s536 = scalar_lea.vmem [#allocation8], %s535
          %537 = dma.done %s533, 128
        $region56: #{forward.1} parent=47 // pred_fallthru
          _
      $region48: #{forward.1} parent=5 // pred_fallthru
        _
    $region6: #{forward.1} parent=1 // loop_footer
      %s24 = sadd.s32 1, %s20
    $region7: #{forward.1} parent=1 // loop_footer_branch
      %19 = sbr.rel target = $region3
    $region8: #{forward.1} parent=1 // loop_exit
      _
    %538 = vsyncpa [#allocation3], 1
    %s539 = scalar_lea.sflag [#allocation3], 1
    %540 = vsyncpa %s539, 1
    %541 = vsyncpa [#allocation6], 1
    %542 = vsyncpa [#allocation4], 1
    %s543 = scalar_lea.sflag [#allocation4], 1
    %544 = vsyncpa %s543, 1
    %545 = vsyncpa [#allocation9], 1
    %s546 = scalar_lea.sflag [#allocation9], 1
    %547 = vsyncpa %s546, 1

</llo_original>
